<compile_context>
chip_gen: v7x
topology: tpu7x:2x2x1
jax: 0.10.0
libtpu: 0.0.40
codegen_flags: <defaults>
</compile_context>

<pallas_src>
import functools

import jax
import jax.numpy as jnp
from jax.experimental import pallas as pl
from jax.experimental.pallas import tpu as pltpu


def _round_up(n, m):
    return (n + m - 1) // m * m


def fused_affine_softmax_kernel(x_ref, w_ref, b_ref, o_ref):
    # One MXU matmul (f32) + bias + exact row softmax, all in f32.
    logits = jnp.dot(x_ref[...], w_ref[...],
                     preferred_element_type=jnp.float32) + b_ref[...]
    m = jnp.max(logits, axis=1, keepdims=True)
    e = jnp.exp(logits - m)
    s = jnp.sum(e, axis=1, keepdims=True)
    o_ref[...] = e / s          # exact normalization (downstream log-probs)


def collapse_params(params):
    """One-time (per optimizer step): collapse the activation-free Linear chain.

    params: ((w1, b1), (w2, b2), ..., (wk, bk)) with w as (in, out), b as (1, out)
    returns: (W, b) with W = w1 @ ... @ wk  and  b = the matching collapsed bias.
    """
    (w, b) = params[0]
    for wk, bk in params[1:]:
        b = b @ wk + bk
        w = w @ wk
    return w.astype(jnp.float32), b.astype(jnp.float32)


@functools.partial(jax.jit, static_argnames=("tile_b",))
def network_forward(x, w, b, *, tile_b=2048):
    """softmax(x @ w + b, axis=1) via a single fused Pallas kernel.

    x: (B, d_in) f32;  w: (d_in, d_out) f32;  b: (1, d_out) f32  (from collapse_params)
    """
    B, d_in = x.shape
    d_out = w.shape[1]

    ALIGN = 8                                   # f32 sublane packing
    # Single grid step for small batches (grid is a sequential loop on v5e/v6e;
    # only large batches benefit from multiple tiles / v7x core sharding).
    tile = min(int(tile_b), _round_up(B, ALIGN))
    tile = _round_up(tile, ALIGN)
    B_pad = _round_up(B, tile)
    # TODO(synk): for very large ragged B a separate tail call would avoid this
    # full-copy pad; the common aligned case takes the zero-copy path below.
    x_in = x if B_pad == B else jnp.pad(x, ((0, B_pad - B), (0, 0)))

    cost = pl.CostEstimate(
        flops=2 * B_pad * d_in * d_out,
        transcendentals=B_pad * d_out,
        bytes_accessed=(B_pad * d_in * 4            # x (f32)
                        + d_in * d_out * 4          # collapsed W (f32, resident)
                        + d_out * 4                 # collapsed bias (f32, resident)
                        + B_pad * d_out * 4),       # out (f32, narrow)
    )

    out = pl.pallas_call(
        fused_affine_softmax_kernel,
        out_shape=jax.ShapeDtypeStruct((B_pad, d_out), jnp.float32),
        grid=(B_pad // tile,),
        in_specs=[
            pl.BlockSpec((tile, d_in), lambda i: (i, 0)),    # x tile (streamed)
            pl.BlockSpec((d_in, d_out), lambda i: (0, 0)),   # collapsed W (resident)
            pl.BlockSpec((1, d_out), lambda i: (0, 0)),      # collapsed bias (resident)
        ],
        out_specs=pl.BlockSpec((tile, d_out), lambda i: (i, 0)),
        compiler_params=pltpu.CompilerParams(dimension_semantics=("parallel",)),
        cost_estimate=cost,
    )(x_in, w, b)

    return out if B_pad == B else out[:B]


def init_linear(key, fan_in, fan_out):
    # Deterministic init mirroring PyTorch's U(-1/sqrt(fan_in), 1/sqrt(fan_in)).
    kw, kb = jax.random.split(key)
    bound = 1.0 / float(fan_in) ** 0.5
    w = jax.random.uniform(kw, (fan_in, fan_out), jnp.float32, -bound, bound)
    b = jax.random.uniform(kb, (1, fan_out), jnp.float32, -bound, bound)
    return w, b


if __name__ == "__main__":
    # Shapes consistent with the module's MLP branch:
    #   input_dims = (32,), nlayers = 2, nl_dims = [64, 32], output_dims = 8
    B, D_IN, NL1, NL2, D_OUT = 64, 32, 64, 32, 8

    key = jax.random.PRNGKey(0)
    kx, k1, k2, k3 = jax.random.split(key, 4)

    x = jax.random.normal(kx, (B, D_IN), jnp.float32)
    params = (
        init_linear(k1, D_IN, NL1),
        init_linear(k2, NL1, NL2),
        init_linear(k3, NL2, D_OUT),
    )

    # Collapse once (hoisted out of the per-step RL inner loop).
    w_c, b_c = collapse_params(params)

    out = network_forward(x, w_c, b_c)
    out = jax.block_until_ready(out)
    assert out.shape == (B, D_OUT)

    # Reference: exact PyTorch semantics (3 f32 matmuls + softmax).  The kernel
    # differs only by the associativity of the f32 collapse.
    (w1, b1), (w2, b2), (w3, b3) = params
    logits = ((x @ w1 + b1) @ w2 + b2) @ w3 + b3
    ref = jax.nn.softmax(logits, axis=1)
    assert jnp.allclose(out, ref, atol=1e-4, rtol=1e-3), float(jnp.max(jnp.abs(out - ref)))

    # Rows must sum to 1 (exact division in-kernel -> f32 roundoff only).
    assert jnp.allclose(jnp.sum(out, axis=1), 1.0, atol=1e-5)

    # Ragged-batch path (pads only to the sublane multiple, single grid step).
    x_small = jax.random.normal(kx, (6, D_IN), jnp.float32)
    out_small = jax.block_until_ready(network_forward(x_small, w_c, b_c))
    ref_small = jax.nn.softmax(((x_small @ w1 + b1) @ w2 + b2) @ w3 + b3, axis=1)
    assert out_small.shape == (6, D_OUT)
    assert jnp.allclose(out_small, ref_small, atol=1e-4, rtol=1e-3)

    print("KERNEL_OK")
</pallas_src>

<mosaic_0001>
module attributes {stable_mosaic.version = 11 : i64} {
  func.func @fused_affine_softmax_kernel(%arg0: i32, %arg1: memref<64x32xf32, #tpu.memory_space<vmem>>, %arg2: memref<32x8xf32, #tpu.memory_space<vmem>>, %arg3: memref<1x8xf32, #tpu.memory_space<vmem>>, %arg4: memref<64x8xf32, #tpu.memory_space<vmem>>) attributes {dimension_semantics = [#tpu.dimension_semantics<parallel>], iteration_bounds = array<i64: 1>, scalar_prefetch = 0 : i64, scratch_operands = 0 : i64, tpu.core_type = #tpu.core_type<tc>, window_params = [{transform_indices = @transform_0, window_bounds = array<i64: 64, 32>}, {pipeline_mode = #tpu.pipeline_mode<synchronous>, transform_indices = @transform_1, window_bounds = array<i64: 32, 8>}, {pipeline_mode = #tpu.pipeline_mode<synchronous>, transform_indices = @transform_2, window_bounds = array<i64: 1, 8>}, {transform_indices = @transform_3, window_bounds = array<i64: 64, 8>}]} {
    %c0 = arith.constant 0 : index
    %c0_0 = arith.constant 0 : index
    %0 = vector.load %arg1[%c0, %c0_0] : memref<64x32xf32, #tpu.memory_space<vmem>>, vector<64x32xf32>
    %c0_1 = arith.constant 0 : index
    %c0_2 = arith.constant 0 : index
    %1 = vector.load %arg2[%c0_1, %c0_2] : memref<32x8xf32, #tpu.memory_space<vmem>>, vector<32x8xf32>
    %cst = arith.constant dense<0.000000e+00> : vector<64x8xf32>
    %2 = tpu.matmul %0, %1, %cst {dimension_numbers = #tpu.dot_dimension_numbers<[1], [0], [0], [1], [0, 0, 1, 1], [], []>} : vector<64x32xf32>, vector<32x8xf32>, vector<64x8xf32> -> vector<64x8xf32>
    %c0_3 = arith.constant 0 : index
    %c0_4 = arith.constant 0 : index
    %3 = vector.load %arg3[%c0_3, %c0_4] : memref<1x8xf32, #tpu.memory_space<vmem>>, vector<1x8xf32>
    %4 = vector.broadcast %3 : vector<1x8xf32> to vector<64x8xf32>
    %5 = arith.addf %2, %4 : vector<64x8xf32>
    %cst_5 = arith.constant dense<0xFF800000> : vector<64xf32>
    %6 = vector.multi_reduction <maximumf>, %5, %cst_5 [1] : vector<64x8xf32> to vector<64xf32>
    %7 = vector.shape_cast %6 : vector<64xf32> to vector<64x1xf32>
    %8 = vector.broadcast %7 : vector<64x1xf32> to vector<64x8xf32>
    %9 = arith.subf %5, %8 : vector<64x8xf32>
    %10 = math.exp %9 : vector<64x8xf32>
    %cst_6 = arith.constant dense<0.000000e+00> : vector<64xf32>
    %11 = vector.multi_reduction <add>, %10, %cst_6 [1] : vector<64x8xf32> to vector<64xf32>
    %12 = vector.shape_cast %11 : vector<64xf32> to vector<64x1xf32>
    %13 = vector.broadcast %12 : vector<64x1xf32> to vector<64x8xf32>
    %14 = arith.divf %10, %13 : vector<64x8xf32>
    %c0_7 = arith.constant 0 : index
    %c0_8 = arith.constant 0 : index
    %15 = vector.load %arg4[%c0_7, %c0_8] : memref<64x8xf32, #tpu.memory_space<vmem>>, vector<64x8xf32>
    tpu.vector_store %arg4[%c0_7, %c0_8], %14 {strides = array<i32>} : memref<64x8xf32, #tpu.memory_space<vmem>>, vector<64x8xf32>,
    return
  }
  func.func @transform_0(%arg0: i32) -> (i32, i32) {
    %c0_i32 = arith.constant 0 : i32
    %c0_i32_0 = arith.constant 0 : i32
    return %arg0, %c0_i32 : i32, i32
  }
  func.func @transform_1(%arg0: i32) -> (i32, i32) {
    %c0_i32 = arith.constant 0 : i32
    %c0_i32_0 = arith.constant 0 : i32
    %c0_i32_1 = arith.constant 0 : i32
    return %c0_i32, %c0_i32_0 : i32, i32
  }
  func.func @transform_2(%arg0: i32) -> (i32, i32) {
    %c0_i32 = arith.constant 0 : i32
    %c0_i32_0 = arith.constant 0 : i32
    %c0_i32_1 = arith.constant 0 : i32
    return %c0_i32, %c0_i32_0 : i32, i32
  }
  func.func @transform_3(%arg0: i32) -> (i32, i32) {
    %c0_i32 = arith.constant 0 : i32
    %c0_i32_0 = arith.constant 0 : i32
    return %arg0, %c0_i32 : i32, i32
  }
}

</mosaic_0001>

<llo_original>
// kernel: network_forward.1
$region0: #{network_forward.1}
  #allocation0 [shape = 'u32[]', space=smem, size = 0x4, offset = 0x4, fixed_abs, tag = 'smem constant byte address 0x4 - core index']
  #allocation1 [shape = 'u32[144,128]{1,0:T(1,128)}', space=vmem, size = 0x12000, scoped, tag = 'internal scratch']
  %s0 = inlined_call_operand.vmem [shape: f32[64,32], index: 0, kind: input, shape index: {}]
  %s1 = inlined_call_operand.vmem [shape: f32[32,8], index: 1, kind: input, shape index: {}]
  %s2 = inlined_call_operand.vmem [shape: f32[1,8], index: 2, kind: input, shape index: {}]
  %s3 = inlined_call_operand.vmem [shape: f32[64,8], index: 3, kind: output, shape index: {}]
  %s4 = sld [smem:[#allocation0]]
  $region22: #{network_forward.1} parent=0
    _
  %s6 = ssub.s32 1, %s4
  %s7 = scalar_select 0, %s6, %s4
  // Predicated region
  $region2: #{network_forward.1} parent=0 // pred_check
    _
  $region3: #{network_forward.1} parent=0 // pred_check_branch
    %9 = sbr.rel (0) target = $region5
  $region4: #{network_forward.1} parent=0 // pred_region
    _
  $region5: #{network_forward.1} parent=0 // pred_fallthru
    _
  // Predicated region
  $region6: #{network_forward.1} parent=0 // pred_check
    _
  $region7: #{network_forward.1} parent=0 // pred_check_branch
    %11 = sbr.rel (0) target = $region9
  $region8: #{network_forward.1} parent=0 // pred_region
    _
  $region9: #{network_forward.1} parent=0 // pred_fallthru
    _
  // Predicated region
  $region10: #{network_forward.1} parent=0 // pred_check
    _
  $region11: #{network_forward.1} parent=0 // pred_check_branch
    %13 = sbr.rel (0) target = $region13
  $region12: #{network_forward.1} parent=0 // pred_region
    _
  $region13: #{network_forward.1} parent=0 // pred_fallthru
    _
  %v14 = vld [vmem:[%s0] sm:$0xff]
  %v15 = vld [vmem:[%s0 + $0x8] sm:$0xff]
  %v16 = vld [vmem:[%s0 + $0x10] sm:$0xff]
  %v17 = vld [vmem:[%s0 + $0x18] sm:$0xff]
  %v18 = vld [vmem:[%s0 + $0x20] sm:$0xff]
  %v19 = vld [vmem:[%s0 + $0x28] sm:$0xff]
  %v20 = vld [vmem:[%s0 + $0x30] sm:$0xff]
  %v21 = vld [vmem:[%s0 + $0x38] sm:$0xff]
  %v22 = vld [vmem:[%s1] sm:$0xff]
  %v23 = vld [vmem:[%s1 + $0x8] sm:$0xff]
  %v24 = vld [vmem:[%s1 + $0x10] sm:$0xff]
  %v25 = vld [vmem:[%s1 + $0x18] sm:$0xff]
  %v26 = vld [vmem:[%s2] sm:$0x1]
  %v28 = vlaneseq
  %v29 = vshrl.u32 %v28, 7
  %v30 = vsub.s32 0, %v29
  %v31 = vrot.slane %v26, %v30
  %vm33 = vcmask 261120
  %v35 = vsel %vm33, %v14, 0
  %v38 = vsel %vm33, %v15, 0
  %v41 = vsel %vm33, %v16, 0
  %v44 = vsel %vm33, %v17, 0
  %v47 = vsel %vm33, %v18, 0
  %v50 = vsel %vm33, %v19, 0
  %v53 = vsel %vm33, %v20, 0
  %v56 = vsel %vm33, %v21, 0
  %58 = vmatprep.subr.mxu0 0.0
  %59 = vmatpush1.msra.mxu0 %v22
  %60 = vmatprep.subr.mxu0 0.0
  %61 = vmatpush1.msra.mxu0 %v23
  %62 = vmatprep.subr.mxu0 0.0
  %63 = vmatpush1.msra.mxu0 %v24
  %64 = vmatprep.subr.mxu0 0.0
  %65 = vmatpush1.msra.mxu0 %v25
  %66 = vmatprep.subr.mxu0 0.0
  %67 = vmatpush1.msra.mxu0 0.0
  %68 = vmatprep.subr.mxu0 0.0
  %69 = vmatpush1.msra.mxu0 0.0
  %70 = vmatprep.subr.mxu0 0.0
  %71 = vmatpush1.msra.mxu0 0.0
  %72 = vmatprep.subr.mxu0 0.0
  %73 = vmatpush1.msra.mxu0 0.0
  %74 = vmatprep.subr.mxu0 0.0
  %75 = vmatpush1.msra.mxu0 0.0
  %76 = vmatprep.subr.mxu0 0.0
  %77 = vmatpush1.msra.mxu0 0.0
  %78 = vmatprep.subr.mxu0 0.0
  %79 = vmatpush1.msra.mxu0 0.0
  %80 = vmatprep.subr.mxu0 0.0
  %81 = vmatpush1.msra.mxu0 0.0
  %82 = vmatprep.subr.mxu0 0.0
  %83 = vmatpush1.msra.mxu0 0.0
  %84 = vmatprep.subr.mxu0 0.0
  %85 = vmatpush1.msra.mxu0 0.0
  %86 = vmatprep.subr.mxu0 0.0
  %87 = vmatpush1.msra.mxu0 0.0
  %88 = vmatprep.subr.mxu0 0.0
  %89 = vmatpush1.msra.mxu0 0.0
  %90 = vmatprep.subr.mxu0 0.0
  %91 = vmatpush1.msra.mxu0 0.0
  %92 = vmatprep.subr.mxu0 0.0
  %93 = vmatpush1.msra.mxu0 0.0
  %94 = vmatprep.subr.mxu0 0.0
  %95 = vmatpush1.msra.mxu0 0.0
  %96 = vmatprep.subr.mxu0 0.0
  %97 = vmatpush1.msra.mxu0 0.0
  %98 = vmatprep.subr.mxu0 0.0
  %99 = vmatpush1.msra.mxu0 0.0
  %100 = vmatprep.subr.mxu0 0.0
  %101 = vmatpush1.msra.mxu0 0.0
  %102 = vmatprep.subr.mxu0 0.0
  %103 = vmatpush1.msra.mxu0 0.0
  %104 = vmatprep.subr.mxu0 0.0
  %105 = vmatpush1.msra.mxu0 0.0
  %106 = vmatprep.subr.mxu0 0.0
  %107 = vmatpush1.msra.mxu0 0.0
  %108 = vmatprep.subr.mxu0 0.0
  %109 = vmatpush1.msra.mxu0 0.0
  %110 = vmatprep.subr.mxu0 0.0
  %111 = vmatpush1.msra.mxu0 0.0
  %112 = vmatprep.subr.mxu0 0.0
  %113 = vmatpush1.msra.mxu0 0.0
  %114 = vmatprep.subr.mxu0 0.0
  %115 = vmatpush1.msra.mxu0 0.0
  %116 = vmatprep.subr.mxu0 0.0
  %117 = vmatpush1.msra.mxu0 0.0
  %118 = vmatprep.subr.mxu0 0.0
  %119 = vmatpush1.msra.mxu0 0.0
  %120 = vmatprep.subr.mxu0 0.0
  %121 = vmatpush1.msra.mxu0 0.0
  %122 = vmatprep.mubr.f32.mxu0 0.0
  %123 = vmatmul.mubr.f32.gmra.mrb[0].mxu0 %v35
  %v124 = vpop.f32.mrb[0].mxu0
  %v125 = vadd.f32 %v31, %v124
  %v126 = vpop.f32.mrb[0].mxu0
  %127 = vmatprep.mubr.f32.mxu0 0.0
  %128 = vmatmul.mubr.f32.gmra.mrb[0].mxu0 %v38
  %v129 = vpop.f32.mrb[0].mxu0
  %v130 = vadd.f32 %v31, %v129
  %v131 = vpop.f32.mrb[0].mxu0
  %132 = vmatprep.mubr.f32.mxu0 0.0
  %133 = vmatmul.mubr.f32.gmra.mrb[0].mxu0 %v41
  %v134 = vpop.f32.mrb[0].mxu0
  %v135 = vadd.f32 %v31, %v134
  %v136 = vpop.f32.mrb[0].mxu0
  %137 = vmatprep.mubr.f32.mxu0 0.0
  %138 = vmatmul.mubr.f32.gmra.mrb[0].mxu0 %v44
  %v139 = vpop.f32.mrb[0].mxu0
  %v140 = vadd.f32 %v31, %v139
  %v141 = vpop.f32.mrb[0].mxu0
  %142 = vmatprep.mubr.f32.mxu0 0.0
  %143 = vmatmul.mubr.f32.gmra.mrb[0].mxu0 %v47
  %v144 = vpop.f32.mrb[0].mxu0
  %v145 = vadd.f32 %v31, %v144
  %v146 = vpop.f32.mrb[0].mxu0
  %147 = vmatprep.mubr.f32.mxu0 0.0
  %148 = vmatmul.mubr.f32.gmra.mrb[0].mxu0 %v50
  %v149 = vpop.f32.mrb[0].mxu0
  %v150 = vadd.f32 %v31, %v149
  %v151 = vpop.f32.mrb[0].mxu0
  %152 = vmatprep.mubr.f32.mxu0 0.0
  %153 = vmatmul.mubr.f32.gmra.mrb[0].mxu0 %v53
  %v154 = vpop.f32.mrb[0].mxu0
  %v155 = vadd.f32 %v31, %v154
  %v156 = vpop.f32.mrb[0].mxu0
  %157 = vmatprep.mubr.f32.mxu0 0.0
  %158 = vmatmul.mubr.f32.gmra.mrb[0].mxu0 %v56
  %v159 = vpop.f32.mrb[0].mxu0
  %v160 = vadd.f32 %v31, %v159
  %v161 = vpop.f32.mrb[0].mxu0
  %162 = vdwg.mxu0
  %vm163 = vcmask 64512
  %v164 = vsel %vm163, %v125, -inf
  %165 = vmax.xlane.f32.xlu0 %v164
  %v166 = vpop.xlane.xlu0 %165
  %v167 = vsel %vm163, %v130, -inf
  %168 = vmax.xlane.f32.xlu0 %v167
  %v169 = vpop.xlane.xlu0 %168
  %v170 = vsel %vm163, %v135, -inf
  %171 = vmax.xlane.f32.xlu0 %v170
  %v172 = vpop.xlane.xlu0 %171
  %v173 = vsel %vm163, %v140, -inf
  %174 = vmax.xlane.f32.xlu0 %v173
  %v175 = vpop.xlane.xlu0 %174
  %v176 = vsel %vm163, %v145, -inf
  %177 = vmax.xlane.f32.xlu0 %v176
  %v178 = vpop.xlane.xlu0 %177
  %v179 = vsel %vm163, %v150, -inf
  %180 = vmax.xlane.f32.xlu0 %v179
  %v181 = vpop.xlane.xlu0 %180
  %v182 = vsel %vm163, %v155, -inf
  %183 = vmax.xlane.f32.xlu0 %v182
  %v184 = vpop.xlane.xlu0 %183
  %v185 = vsel %vm163, %v160, -inf
  %186 = vmax.xlane.f32.xlu0 %v185
  %v187 = vpop.xlane.xlu0 %186
  %v188 = vsub.f32 %v125, %v166
  %v189 = vsub.f32 %v130, %v169
  %v190 = vsub.f32 %v135, %v172
  %v191 = vsub.f32 %v140, %v175
  %v192 = vsub.f32 %v145, %v178
  %v193 = vsub.f32 %v150, %v181
  %v194 = vsub.f32 %v155, %v184
  %v195 = vsub.f32 %v160, %v187
  %v196 = vmul.f32 %v188, 1.442695
  %v197 = vpow.pop %v196
  %v198 = vmul.f32 %v189, 1.442695
  %v199 = vpow.pop %v198
  %v200 = vmul.f32 %v190, 1.442695
  %v201 = vpow.pop %v200
  %v202 = vmul.f32 %v191, 1.442695
  %v203 = vpow.pop %v202
  %v204 = vmul.f32 %v192, 1.442695
  %v205 = vpow.pop %v204
  %v206 = vmul.f32 %v193, 1.442695
  %v207 = vpow.pop %v206
  %v208 = vmul.f32 %v194, 1.442695
  %v209 = vpow.pop %v208
  %v210 = vmul.f32 %v195, 1.442695
  %v211 = vpow.pop %v210
  %v212 = vsel %vm163, %v197, 0.0
  %213 = vadd.xlane.f32.xlu0 %v212
  %v214 = vpop.xlane.xlu0 %213
  %v215 = vsel %vm163, %v199, 0.0
  %216 = vadd.xlane.f32.xlu0 %v215
  %v217 = vpop.xlane.xlu0 %216
  %v218 = vsel %vm163, %v201, 0.0
  %219 = vadd.xlane.f32.xlu0 %v218
  %v220 = vpop.xlane.xlu0 %219
  %v221 = vsel %vm163, %v203, 0.0
  %222 = vadd.xlane.f32.xlu0 %v221
  %v223 = vpop.xlane.xlu0 %222
  %v224 = vsel %vm163, %v205, 0.0
  %225 = vadd.xlane.f32.xlu0 %v224
  %v226 = vpop.xlane.xlu0 %225
  %v227 = vsel %vm163, %v207, 0.0
  %228 = vadd.xlane.f32.xlu0 %v227
  %v229 = vpop.xlane.xlu0 %228
  %v230 = vsel %vm163, %v209, 0.0
  %231 = vadd.xlane.f32.xlu0 %v230
  %v232 = vpop.xlane.xlu0 %231
  %v233 = vsel %vm163, %v211, 0.0
  %234 = vadd.xlane.f32.xlu0 %v233
  %v235 = vpop.xlane.xlu0 %234
  %v236 = vrcp.pop %v214
  %v237 = vmul.f32 %v197, %v236
  %v238 = vrcp.pop %v217
  %v239 = vmul.f32 %v199, %v238
  %v240 = vrcp.pop %v220
  %v241 = vmul.f32 %v201, %v240
  %v242 = vrcp.pop %v223
  %v243 = vmul.f32 %v203, %v242
  %v244 = vrcp.pop %v226
  %v245 = vmul.f32 %v205, %v244
  %v246 = vrcp.pop %v229
  %v247 = vmul.f32 %v207, %v246
  %v248 = vrcp.pop %v232
  %v249 = vmul.f32 %v209, %v248
  %v250 = vrcp.pop %v235
  %v251 = vmul.f32 %v211, %v250
  %252 = vst.msk [vmem:[%s3] sm:$0xff] %vm163, %v237
  %253 = vst.msk [vmem:[%s3 + $0x8] sm:$0xff] %vm163, %v239
  %254 = vst.msk [vmem:[%s3 + $0x10] sm:$0xff] %vm163, %v241
  %255 = vst.msk [vmem:[%s3 + $0x18] sm:$0xff] %vm163, %v243
  %256 = vst.msk [vmem:[%s3 + $0x20] sm:$0xff] %vm163, %v245
  %257 = vst.msk [vmem:[%s3 + $0x28] sm:$0xff] %vm163, %v247
  %258 = vst.msk [vmem:[%s3 + $0x30] sm:$0xff] %vm163, %v249
  %259 = vst.msk [vmem:[%s3 + $0x38] sm:$0xff] %vm163, %v251
  // Predicated region
  $region14: #{network_forward.1} parent=0 // pred_check
    _
  $region15: #{network_forward.1} parent=0 // pred_check_branch
    %261 = sbr.rel (0) target = $region17
  $region16: #{network_forward.1} parent=0 // pred_region
    _
  $region17: #{network_forward.1} parent=0 // pred_fallthru
    _
  // Predicated region
  $region18: #{network_forward.1} parent=0 // pred_check
    _
  $region19: #{network_forward.1} parent=0 // pred_check_branch
    %263 = sbr.rel (0) target = $region21
  $region20: #{network_forward.1} parent=0 // pred_region
    _
  $region21: #{network_forward.1} parent=0 // pred_fallthru
    _

</llo_original>
